<compile_context>
chip_gen: v7x
topology: tpu7x:2x2x1
jax: 0.10.0
libtpu: 0.0.40
codegen_flags: <defaults>
</compile_context>

<pallas_src>
import functools

import jax
import jax.numpy as jnp
from jax import lax
from jax.experimental import pallas as pl
from jax.experimental.pallas import tpu as pltpu


# ----------------------------- Pallas kernel -----------------------------

def _conv_in_lrelu_kernel(p_ref, w_ref, o_ref, *, eps, neg_slope):
    # p_ref: (Bt, Kp, HW)    bf16 patches (im2col, K-major)
    # w_ref: (C_out, Kp)     bf16 flattened conv weight
    # o_ref: (Bt, C_out, HW) f32 output (lane-dense: HW on the lane axis)
    w = w_ref[...]
    bt = o_ref.shape[0]
    inv_hw = 1.0 / o_ref.shape[-1]
    for bi in range(bt):  # static unroll; Bt is small
        # Convolution as MXU matmul, f32 accumulation.
        y = jnp.dot(w, p_ref[bi], preferred_element_type=jnp.float32)  # [C_out, HW]

        # InstanceNorm2d: per-channel stats over the spatial (lane) axis,
        # single sweep with biased variance (matches torch).
        mean = jnp.sum(y, axis=-1, keepdims=True) * inv_hw
        ex2 = jnp.sum(y * y, axis=-1, keepdims=True) * inv_hw
        var = ex2 - mean * mean
        y_n = (y - mean) * lax.rsqrt(var + eps)

        # LeakyReLU(negative_slope).
        o_ref[bi] = jnp.where(y_n > 0, y_n, neg_slope * y_n).astype(o_ref.dtype)


# ------------------------------- glue -------------------------------------

def _im2col_reflect(x, kh, kw, stride, padding):
    """x: [N, C, H, W] -> patches [N, C*kh*kw, Ho*Wo] (K-major) with reflect pad."""
    if padding > 0:
        x = jnp.pad(x, ((0, 0), (0, 0), (padding, padding), (padding, padding)),
                    mode="reflect")
    n, c, hp, wp = x.shape
    ho = (hp - kh) // stride + 1
    wo = (wp - kw) // stride + 1
    cols = []
    for i in range(kh):
        for j in range(kw):
            cols.append(x[:, :, i:i + ho * stride:stride, j:j + wo * stride:stride])
    # [N, C, kh*kw, Ho, Wo]; flattened K order = ci*kh*kw + i*kw + j, matching
    # torch's weight.reshape(C_out, C_in*kh*kw).
    p = jnp.stack(cols, axis=2).reshape(n, c * kh * kw, ho * wo)
    return p, ho, wo


def _pick_block_batch(n):
    """Images per grid step: biggest divisor of n that leaves >= 2 grid steps."""
    if n <= 2:
        return 1
    for bt in range(n // 2, 0, -1):
        if n % bt == 0:
            return bt
    return 1


def conv_instnorm_leakyrelu(x, weight, bias=None, *, stride, padding,
                            eps=1e-5, negative_slope=0.2,
                            compute_dtype=jnp.bfloat16):
    """x: [N, C_in, H, W], weight: [C_out, C_in, KH, KW], bias: [C_out] or None.
    Returns LeakyReLU(InstanceNorm(Conv2d_reflect(x))) as [N, C_out, Ho, Wo].

    The conv bias cancels exactly under InstanceNorm's mean subtraction
    (affine=False), so it is intentionally unused.
    """
    del bias  # mathematically cancelled by instance norm
    n, c_in, _, _ = x.shape
    c_out, _, kh, kw = weight.shape

    patches, ho, wo = _im2col_reflect(x, kh, kw, stride, padding)  # [N, K, HW]
    hw = ho * wo
    k = c_in * kh * kw

    w_mat = weight.reshape(c_out, k)                               # [C_out, K]

    # Zero-pad K to a multiple of 8 (sublane friendly); zeros add nothing.
    kp = (k + 7) // 8 * 8
    if kp != k:
        patches = jnp.pad(patches, ((0, 0), (0, kp - k), (0, 0)))
        w_mat = jnp.pad(w_mat, ((0, 0), (0, kp - k)))

    patches = patches.astype(compute_dtype)
    w_mat = w_mat.astype(compute_dtype)

    bt = _pick_block_batch(n)
    grid = (n // bt,)

    # VMEM budget: double-buffered patch + output blocks plus the small weight.
    bytes_in = bt * kp * hw * jnp.dtype(compute_dtype).itemsize
    bytes_out = bt * c_out * hw * 4
    vmem_limit = int(min(64 * 1024 * 1024,
                         max(16 * 1024 * 1024,
                             4 * (bytes_in + bytes_out) + 2 * 1024 * 1024)))

    kernel = functools.partial(_conv_in_lrelu_kernel, eps=eps,
                               neg_slope=negative_slope)

    out = pl.pallas_call(
        kernel,
        out_shape=jax.ShapeDtypeStruct((n, c_out, hw), jnp.float32),
        grid_spec=pltpu.PrefetchScalarGridSpec(
            num_scalar_prefetch=0,
            grid=grid,
            in_specs=[
                pl.BlockSpec((bt, kp, hw), lambda b: (b, 0, 0)),
                pl.BlockSpec((c_out, kp), lambda b: (0, 0)),
            ],
            out_specs=pl.BlockSpec((bt, c_out, hw), lambda b: (b, 0, 0)),
        ),
        compiler_params=pltpu.CompilerParams(
            dimension_semantics=("parallel",),
            vmem_limit_bytes=vmem_limit),
    )(patches, w_mat)

    # [N, C_out, HW] -> [N, C_out, Ho, Wo]  (no transpose needed).
    return out.reshape(n, c_out, ho, wo)


# ------------------------------ reference --------------------------------

def _reference(x, weight, bias, *, stride, padding, eps=1e-5, neg_slope=0.2,
               compute_dtype=jnp.float32):
    xp = jnp.pad(x, ((0, 0), (0, 0), (padding, padding), (padding, padding)),
                 mode="reflect")
    y = lax.conv_general_dilated(
        xp.astype(compute_dtype), weight.astype(compute_dtype),
        window_strides=(stride, stride), padding="VALID",
        dimension_numbers=("NCHW", "OIHW", "NCHW"),
        preferred_element_type=jnp.float32)
    y = y + bias.reshape(1, -1, 1, 1).astype(jnp.float32)
    mean = y.mean(axis=(2, 3), keepdims=True)
    var = ((y - mean) ** 2).mean(axis=(2, 3), keepdims=True)
    y = (y - mean) * lax.rsqrt(var + eps)
    return jnp.where(y > 0, y, neg_slope * y)


# -------------------------------- main ------------------------------------

if __name__ == "__main__":
    # Module config: in_channels=4, out_channels=8, kernel=3, stride=1, padding=1
    in_channels, out_channels, kernel_size, stride, padding = 4, 8, 3, 1, 1
    N, H, W = 2, 16, 16

    key = jax.random.PRNGKey(0)
    kx, kw_, kb = jax.random.split(key, 3)

    x = jax.random.normal(kx, (N, in_channels, H, W), dtype=jnp.float32)
    # Deterministic parameter init (Conv2d-like uniform fan-in scaling).
    fan_in = in_channels * kernel_size * kernel_size
    bound = 1.0 / (fan_in ** 0.5)
    weight = jax.random.uniform(
        kw_, (out_channels, in_channels, kernel_size, kernel_size),
        minval=-bound, maxval=bound, dtype=jnp.float32)
    bias = jax.random.uniform(kb, (out_channels,), minval=-bound, maxval=bound,
                              dtype=jnp.float32)

    out = conv_instnorm_leakyrelu(x, weight, bias, stride=stride, padding=padding)
    out = jax.block_until_ready(out)
    assert out.shape == (N, out_channels, H, W)

    # Tight check vs a precision-matched reference (bf16 conv operands, f32 acc).
    ref_bf16 = _reference(x, weight, bias, stride=stride, padding=padding,
                          compute_dtype=jnp.bfloat16)
    assert jnp.allclose(out, ref_bf16, atol=1e-3, rtol=1e-3), \
        "mismatch vs bf16-matched reference"

    # Loose check vs the full-f32 module semantics (bounds bf16 operand rounding).
    ref_f32 = _reference(x, weight, bias, stride=stride, padding=padding,
                         compute_dtype=jnp.float32)
    assert jnp.allclose(out, ref_f32, atol=5e-2, rtol=5e-2), \
        "mismatch vs f32 reference"

    print("KERNEL_OK")
</pallas_src>

<mosaic_0001>
module attributes {stable_mosaic.version = 11 : i64} {
  func.func @_conv_in_lrelu_kernel(%arg0: i32, %arg1: memref<1x40x256xbf16, #tpu.memory_space<vmem>>, %arg2: memref<8x40xbf16, #tpu.memory_space<vmem>>, %arg3: memref<1x8x256xf32, #tpu.memory_space<vmem>>) attributes {dimension_semantics = [#tpu.dimension_semantics<parallel>], iteration_bounds = array<i64: 2>, scalar_prefetch = 0 : i64, scratch_operands = 0 : i64, tpu.core_type = #tpu.core_type<tc>, window_params = [{transform_indices = @transform_0, window_bounds = array<i64: 1, 40, 256>}, {pipeline_mode = #tpu.pipeline_mode<synchronous>, transform_indices = @transform_1, window_bounds = array<i64: 8, 40>}, {transform_indices = @transform_2, window_bounds = array<i64: 1, 8, 256>}]} {
    %c0 = arith.constant 0 : index
    %c0_0 = arith.constant 0 : index
    %0 = vector.load %arg2[%c0, %c0_0] : memref<8x40xbf16, #tpu.memory_space<vmem>>, vector<8x40xbf16>
    %c0_1 = arith.constant 0 : index
    %c0_2 = arith.constant 0 : index
    %c0_3 = arith.constant 0 : index
    %1 = vector.load %arg1[%c0_1, %c0_2, %c0_3] : memref<1x40x256xbf16, #tpu.memory_space<vmem>>, vector<1x40x256xbf16>
    %2 = vector.shape_cast %1 : vector<1x40x256xbf16> to vector<40x256xbf16>
    %cst = arith.constant dense<0.000000e+00> : vector<8x256xf32>
    %3 = tpu.matmul %0, %2, %cst {dimension_numbers = #tpu.dot_dimension_numbers<[1], [0], [0], [1], [0, 0, 1, 1], [], []>} : vector<8x40xbf16>, vector<40x256xbf16>, vector<8x256xf32> -> vector<8x256xf32>
    %cst_4 = arith.constant dense<0.000000e+00> : vector<8xf32>
    %4 = vector.multi_reduction <add>, %3, %cst_4 [1] : vector<8x256xf32> to vector<8xf32>
    %5 = vector.shape_cast %4 : vector<8xf32> to vector<8x1xf32>
    %cst_5 = arith.constant 3.906250e-03 : f32
    %6 = vector.broadcast %cst_5 : f32 to vector<8x1xf32>
    %7 = arith.mulf %5, %6 : vector<8x1xf32>
    %8 = arith.mulf %3, %3 : vector<8x256xf32>
    %cst_6 = arith.constant dense<0.000000e+00> : vector<8xf32>
    %9 = vector.multi_reduction <add>, %8, %cst_6 [1] : vector<8x256xf32> to vector<8xf32>
    %10 = vector.shape_cast %9 : vector<8xf32> to vector<8x1xf32>
    %cst_7 = arith.constant 3.906250e-03 : f32
    %11 = vector.broadcast %cst_7 : f32 to vector<8x1xf32>
    %12 = arith.mulf %10, %11 : vector<8x1xf32>
    %13 = arith.mulf %7, %7 : vector<8x1xf32>
    %14 = arith.subf %12, %13 : vector<8x1xf32>
    %15 = vector.broadcast %7 : vector<8x1xf32> to vector<8x256xf32>
    %16 = arith.subf %3, %15 : vector<8x256xf32>
    %cst_8 = arith.constant 9.99999974E-6 : f32
    %17 = vector.broadcast %cst_8 : f32 to vector<8x1xf32>
    %18 = arith.addf %14, %17 : vector<8x1xf32>
    %19 = math.rsqrt %18 : vector<8x1xf32>
    %20 = vector.broadcast %19 : vector<8x1xf32> to vector<8x256xf32>
    %21 = arith.mulf %16, %20 : vector<8x256xf32>
    %cst_9 = arith.constant 0.000000e+00 : f32
    %22 = vector.broadcast %cst_9 : f32 to vector<8x256xf32>
    %23 = arith.cmpf ogt, %21, %22 : vector<8x256xf32>
    %cst_10 = arith.constant 2.000000e-01 : f32
    %24 = vector.broadcast %cst_10 : f32 to vector<8x256xf32>
    %25 = arith.mulf %24, %21 : vector<8x256xf32>
    %26 = arith.select %23, %21, %25 : vector<8x256xi1>, vector<8x256xf32>
    %c0_11 = arith.constant 0 : index
    %c0_12 = arith.constant 0 : index
    %c0_13 = arith.constant 0 : index
    %27 = vector.load %arg3[%c0_11, %c0_12, %c0_13] : memref<1x8x256xf32, #tpu.memory_space<vmem>>, vector<1x8x256xf32>
    %28 = vector.shape_cast %27 : vector<1x8x256xf32> to vector<8x256xf32>
    %29 = vector.shape_cast %26 : vector<8x256xf32> to vector<1x8x256xf32>
    tpu.vector_store %arg3[%c0_11, %c0_12, %c0_13], %29 {strides = array<i32>} : memref<1x8x256xf32, #tpu.memory_space<vmem>>, vector<1x8x256xf32>,
    return
  }
  func.func @transform_0(%arg0: i32) -> (i32, i32, i32) {
    %c0_i32 = arith.constant 0 : i32
    %c0_i32_0 = arith.constant 0 : i32
    %c0_i32_1 = arith.constant 0 : i32
    return %arg0, %c0_i32, %c0_i32_0 : i32, i32, i32
  }
  func.func @transform_1(%arg0: i32) -> (i32, i32) {
    %c0_i32 = arith.constant 0 : i32
    %c0_i32_0 = arith.constant 0 : i32
    %c0_i32_1 = arith.constant 0 : i32
    return %c0_i32, %c0_i32_0 : i32, i32
  }
  func.func @transform_2(%arg0: i32) -> (i32, i32, i32) {
    %c0_i32 = arith.constant 0 : i32
    %c0_i32_0 = arith.constant 0 : i32
    %c0_i32_1 = arith.constant 0 : i32
    return %arg0, %c0_i32, %c0_i32_0 : i32, i32, i32
  }
}

</mosaic_0001>

<llo_original>
// kernel: tpu_custom_call.1
$region0: #{tpu_custom_call.1}
  #allocation0 [shape = 'u32[]', space=smem, size = 0x4, offset = 0x4, fixed_abs, tag = 'smem constant byte address 0x4 - core index']
  #allocation1 [shape = 'u32[144,128]{1,0:T(1,128)}', space=vmem, size = 0x12000, scoped, tag = 'internal scratch']
  %s0 = inlined_call_operand.hbm [shape: bf16[2,40,256], index: 0, kind: input, shape index: {}]
  %s1 = inlined_call_operand.hbm [shape: bf16[8,40], index: 1, kind: input, shape index: {}]
  %s2 = inlined_call_operand.hbm [shape: f32[2,8,256], index: 2, kind: output, shape index: {}]
  %s3 = sld [smem:[#allocation0]]
  $region49: #{tpu_custom_call.1} parent=0
    _
  %s5 = ssub.s32 1, %s3
  %s6 = scalar_select 0, %s5, %s3
  $region1: #{tpu_custom_call.1} parent=0
    #allocation2 [shape = 'u8[40960]{0}', space=vmem, size = 0xa000, scoped, tag = 'input window, operand 0']
    #allocation3 [shape = 's32[2]{0}', space=sflag, size = 0x8, scoped, tag = 'scoped memory for tpu_custom_call.1']
    #allocation4 [shape = 's32[2]{0}', space=sflag, size = 0x8, scoped, tag = 'scoped memory for tpu_custom_call.1']
    #allocation5 [shape = 'u8[2048]{0}', space=vmem, size = 0x800, scoped, tag = 'input window, operand 1, single buffered']
    #allocation6 [shape = 's32[1]{0}', space=sflag, size = 0x4, scoped, tag = 'scoped memory for tpu_custom_call.1']
    #allocation7 [shape = 'u8[16384]{0}', space=vmem, size = 0x4000, scoped, tag = 'output window, operand 0']
    %7 = vsyncpa [#allocation3], 0
    %s8 = scalar_lea.sflag [#allocation3], 1
    %9 = vsyncpa %s8, 0
    %10 = vsyncpa [#allocation6], 0
    %11 = vsyncpa [#allocation4], 0
    %s12 = scalar_lea.sflag [#allocation4], 1
    %13 = vsyncpa %s12, 0
    loop: start=0, step=1, limit=4
    $region2: #{tpu_custom_call.1} parent=1 // loop_pre_header
      _
    $region3: #{tpu_custom_call.1} parent=1 // loop_header
      %s15 = sphi 0, %s19
      %p16 = scmp.ge.s32.totalorder %s15, 4
      %s25 = sphi 0, %s27
      %s28 = sphi 0, %s25
      %s29 = sphi 0, %s28
      %s45 = sphi 0, %s29
      %s49 = sphi 0, %s49
      %s51 = sphi 0, %s49
      %s52 = sphi 0, %s51
      %s66 = sphi 0, %s52
      %s72 = sphi 0, %s74
      %s75 = sphi 0, %s72
      %s76 = sphi 0, %s75
      %s92 = sphi 0, %s76
    $region4: #{tpu_custom_call.1} parent=1 // loop_header_branch
      %18 = sbr.rel (%p16) target = $region8
    $region5: #{tpu_custom_call.1} parent=1 // loop_body
      %s20 = ssub.s32 %s15, 1
      %s21 = ssub.s32 %s15, 2
      %s22 = sadd.s32 %s15, 1
      %s23 = ssub.s32 %s15, %s22
      %p24 = scmp.eq.s32.totalorder %s23, 0
      %s26 = sadd.s32 %s25, 1
      %s27 = scalar_select %p24, %s25, %s26
      %p30 = pneg %p24
      %p31 = scmp.eq.s32.totalorder %s15, 1
      %p32 = por %p30, %p31
      %p33 = scmp.ne.s32.totalorder %s25, %s28
      %p34 = scmp.eq.s32.totalorder %s15, 0
      %p35 = por %p33, %p34
      %p36 = scmp.ne.s32.totalorder %s25, %s28
      %p37 = scmp.eq.s32.totalorder %s20, 1
      %p38 = por %p36, %p37
      %p39 = scmp.ne.s32.totalorder %s28, %s29
      %p40 = scmp.eq.s32.totalorder %s20, 0
      %p41 = por %p39, %p40
      %p42 = scmp.ne.s32.totalorder %s28, %s29
      %p43 = scmp.eq.s32.totalorder %s21, 1
      %p44 = por %p42, %p43
      %p46 = scmp.ne.s32.totalorder %s29, %s45
      %p47 = scmp.eq.s32.totalorder %s21, 0
      %p48 = por %p46, %p47
      %s50 = sadd.s32 %s49, 1
      %p53 = scmp.eq.s32.totalorder %s15, 1
      %p54 = scmp.ne.s32.totalorder %s49, %s51
      %p55 = scmp.eq.s32.totalorder %s15, 0
      %p56 = por %p54, %p55
      %p57 = scmp.ne.s32.totalorder %s49, %s51
      %p58 = scmp.eq.s32.totalorder %s20, 1
      %p59 = por %p57, %p58
      %p60 = scmp.ne.s32.totalorder %s51, %s52
      %p61 = scmp.eq.s32.totalorder %s20, 0
      %p62 = por %p60, %p61
      %p63 = scmp.ne.s32.totalorder %s51, %s52
      %p64 = scmp.eq.s32.totalorder %s21, 1
      %p65 = por %p63, %p64
      %p67 = scmp.ne.s32.totalorder %s52, %s66
      %p68 = scmp.eq.s32.totalorder %s21, 0
      %p69 = por %p67, %p68
      %s70 = ssub.s32 %s15, %s22
      %p71 = scmp.eq.s32.totalorder %s70, 0
      %s73 = sadd.s32 %s72, 1
      %s74 = scalar_select %p71, %s72, %s73
      %p77 = pneg %p71
      %p78 = scmp.eq.s32.totalorder %s15, 1
      %p79 = por %p77, %p78
      %p80 = scmp.ne.s32.totalorder %s72, %s75
      %p81 = scmp.eq.s32.totalorder %s15, 0
      %p82 = por %p80, %p81
      %p83 = scmp.ne.s32.totalorder %s72, %s75
      %p84 = scmp.eq.s32.totalorder %s20, 1
      %p85 = por %p83, %p84
      %p86 = scmp.ne.s32.totalorder %s75, %s76
      %p87 = scmp.eq.s32.totalorder %s20, 0
      %p88 = por %p86, %p87
      %p89 = scmp.ne.s32.totalorder %s75, %s76
      %p90 = scmp.eq.s32.totalorder %s21, 1
      %p91 = por %p89, %p90
      %p93 = scmp.ne.s32.totalorder %s76, %s92
      %p94 = scmp.eq.s32.totalorder %s21, 0
      %p95 = por %p93, %p94
      %p96 = scmp.le.s32.totalorder 1, %s15
      %p97 = scmp.lt.s32.totalorder %s15, 3
      %p98 = pnand %p96, %p97
      %p99 = pneg %p98
      // Predicated region
      $region9: #{tpu_custom_call.1} parent=5 // pred_check
        _
      $region10: #{tpu_custom_call.1} parent=5 // pred_check_branch
        %101 = sbr.rel (%p98) target = $region12
      $region11: #{tpu_custom_call.1} parent=5 // pred_region
        %s102 = ssub.s32 %s15, 1
        // Predicated region
        $region13: #{tpu_custom_call.1} parent=11 // pred_check
          %p103 = pneg %p62
        $region14: #{tpu_custom_call.1} parent=11 // pred_check_branch
          %105 = sbr.rel (%p103) target = $region16
        $region15: #{tpu_custom_call.1} parent=11 // pred_region
          %s107 = ssub.s32 64, 64
          %108 = vsyncadd [#allocation6], %s107
          %s110 = sshll.u32 [#allocation5], 4
          %s111 = int_to_ptr.vmem [resolvable:$true] %s110
          %113 = dma.hbm_to_vmem [thread:$0]  %s1, 64, %s111, [#allocation6]
        $region16: #{tpu_custom_call.1} parent=11 // pred_fallthru
          _
      $region12: #{tpu_custom_call.1} parent=5 // pred_fallthru
        _
      %p114 = scmp.lt.s32.totalorder %s15, 2
      // Predicated region
      $region17: #{tpu_custom_call.1} parent=5 // pred_check
        %p115 = pneg %p114
      $region18: #{tpu_custom_call.1} parent=5 // pred_check_branch
        %117 = sbr.rel (%p115) target = $region20
      $region19: #{tpu_custom_call.1} parent=5 // pred_region
        // Predicated region
        $region21: #{tpu_custom_call.1} parent=19 // pred_check
          %p118 = pneg %p35
        $region22: #{tpu_custom_call.1} parent=19 // pred_check_branch
          %120 = sbr.rel (%p118) target = $region24
        $region23: #{tpu_custom_call.1} parent=19 // pred_region
          %s121 = sand.u32 %s25, 1
          %s122 = scalar_lea.sflag [#allocation3], %s121
          %s123 = sand.u32 %s25, 1
          %s124 = smul.addr %s123, 40
          %s125 = scalar_lea.vmem [#allocation2], %s124
          %s127 = ssub.s32 640, 640
          %128 = vsyncadd %s122, %s127
          %s129 = smul.addr %s15, 10
          %s130 = smul.addr %s129, 64
          %s131 = scalar_lea.hbm %s0, %s130
          %s132 = sshll.u32 %s125, 4
          %s133 = int_to_ptr.vmem [resolvable:$true] %s132
          %138 = dma.hbm_to_vmem [thread:$0]  %s131, 640, %s133, %s122, 128, 128, 8
        $region24: #{tpu_custom_call.1} parent=19 // pred_fallthru
          _
      $region20: #{tpu_custom_call.1} parent=5 // pred_fallthru
        _
      %p139 = scmp.le.s32.totalorder 1, %s15
      %p140 = scmp.lt.s32.totalorder %s15, 3
      %p141 = pnand %p139, %p140
      %p142 = pneg %p141
      // Predicated region
      $region25: #{tpu_custom_call.1} parent=5 // pred_check
        _
      $region26: #{tpu_custom_call.1} parent=5 // pred_check_branch
        %144 = sbr.rel (%p141) target = $region28
      $region27: #{tpu_custom_call.1} parent=5 // pred_region
        %s145 = ssub.s32 %s15, 1
        %s146 = sand.u32 %s28, 1
        %s147 = scalar_lea.sflag [#allocation3], %s146
        %s148 = sand.u32 %s28, 1
        %s149 = smul.addr %s148, 40
        %s150 = scalar_lea.vmem [#allocation2], %s149
        // Predicated region
        $region29: #{tpu_custom_call.1} parent=27 // pred_check
          %p151 = pneg %p41
        $region30: #{tpu_custom_call.1} parent=27 // pred_check_branch
          %153 = sbr.rel (%p151) target = $region32
        $region31: #{tpu_custom_call.1} parent=27 // pred_region
          %154 = dma.done %s147, 640
        $region32: #{tpu_custom_call.1} parent=27 // pred_fallthru
          _
        // Predicated region
        $region33: #{tpu_custom_call.1} parent=27 // pred_check
          %p155 = pneg %p62
        $region34: #{tpu_custom_call.1} parent=27 // pred_check_branch
          %157 = sbr.rel (%p155) target = $region36
        $region35: #{tpu_custom_call.1} parent=27 // pred_region
          %158 = dma.done [#allocation6], 64
        $region36: #{tpu_custom_call.1} parent=27 // pred_fallthru
          _
        %s159 = sand.u32 %s28, 1
        %s160 = scalar_lea.sflag [#allocation3], %s159
        %s161 = sand.u32 %s28, 1
        %s162 = smul.addr %s161, 40
        %s163 = scalar_lea.vmem [#allocation2], %s162
        %p164 = pneg %p41
        %p165 = pneg %p38
        %p166 = pneg %p62
        %p167 = pneg %p59
        %p168 = pneg %p88
        %p169 = pneg %p85
        %s170 = sand.u32 %s75, 1
        %s171 = scalar_lea.sflag [#allocation4], %s170
        %s172 = sand.u32 %s75, 1
        %s173 = smul.addr %s172, 16
        %s174 = scalar_lea.vmem [#allocation7], %s173
        %v176 = vld [vmem:[#allocation5] sm:$0xf]
        %v177 = vld [vmem:[%s150] sm:$0xff]
        %v178 = vld [vmem:[%s150 + $0x8] sm:$0xff]
        %v179 = vld [vmem:[%s150 + $0x10] sm:$0xff]
        %v180 = vld [vmem:[%s150 + $0x18] sm:$0xff]
        %v181 = vld [vmem:[%s150 + $0x20] sm:$0xff]
        %v187 = vunpack.c.l.b16 %v177
        %v188 = vunpack.c.h.b16 %v177
        %v189 = vunpack.c.l.b16 %v178
        %v190 = vunpack.c.h.b16 %v178
        %v191 = vunpack.c.l.b16 %v179
        %v192 = vunpack.c.h.b16 %v179
        %v193 = vunpack.c.l.b16 %v180
        %v194 = vunpack.c.h.b16 %v180
        %v195 = vunpack.c.l.b16 %v181
        %v196 = vunpack.c.h.b16 %v181
        %v197 = vpack.c.b16 %v189, %v187
        %v198 = vpack.c.b16 %v190, %v188
        %v199 = vpack.c.b16 %v193, %v191
        %v200 = vpack.c.b16 %v194, %v192
        %v201 = vpack.c.b16 %v195, %v195
        %v202 = vpack.c.b16 %v196, %v196
        %vm207 = vcmask 326656
        %v209 = vsel %vm207, %v176, 0
        %vm211 = vcmask 1043456
        %v213 = vsel %vm211, %v201, 0
        %v216 = vsel %vm211, %v202, 0
        %218 = vmatprep.subr.bf16.mxu0 %v198
        %219 = vmatpush1.bf16.msra.mxu0 %v197
        %220 = vmatprep.subr.bf16.mxu0 %v200
        %221 = vmatpush1.bf16.msra.mxu0 %v199
        %222 = vmatprep.subr.bf16.mxu0 %v216
        %223 = vmatpush1.bf16.msra.mxu0 %v213
        %224 = vmatprep.subr.bf16.mxu0 0
        %225 = vmatpush1.bf16.msra.mxu0 0
        %226 = vmatprep.subr.bf16.mxu0 0
        %227 = vmatpush1.bf16.msra.mxu0 0
        %228 = vmatprep.subr.bf16.mxu0 0
        %229 = vmatpush1.bf16.msra.mxu0 0
        %230 = vmatprep.subr.bf16.mxu0 0
        %231 = vmatpush1.bf16.msra.mxu0 0
        %232 = vmatprep.subr.bf16.mxu0 0
        %233 = vmatpush1.bf16.msra.mxu0 0
        %234 = vmatprep.subr.bf16.mxu0 0
        %235 = vmatpush1.bf16.msra.mxu0 0
        %236 = vmatprep.subr.bf16.mxu0 0
        %237 = vmatpush1.bf16.msra.mxu0 0
        %238 = vmatprep.subr.bf16.mxu0 0
        %239 = vmatpush1.bf16.msra.mxu0 0
        %240 = vmatprep.subr.bf16.mxu0 0
        %241 = vmatpush1.bf16.msra.mxu0 0
        %242 = vmatprep.subr.bf16.mxu0 0
        %243 = vmatpush1.bf16.msra.mxu0 0
        %244 = vmatprep.subr.bf16.mxu0 0
        %245 = vmatpush1.bf16.msra.mxu0 0
        %246 = vmatprep.subr.bf16.mxu0 0
        %247 = vmatpush1.bf16.msra.mxu0 0
        %248 = vmatprep.subr.bf16.mxu0 0
        %249 = vmatpush1.bf16.msra.mxu0 0
        %250 = vmatprep.mubr.bf16.mxu0 0
        %251 = vmatmul.mubr.bf16.gmra.mrb[0].mxu0 %v209
        %v252 = vpop.f32.mrb[0].mxu0
        %v253 = vadd.f32 0.0, %v252
        %v254 = vpop.f32.mrb[0].mxu0
        %v255 = vadd.f32 0.0, %v254
        %v256 = vpop.f32.mrb[0].mxu0
        %v257 = vpop.f32.mrb[0].mxu0
        %258 = vdwg.mxu0
        %v259 = vadd.f32 %v253, %v255
        %260 = vadd.xlane.f32.xlu0 %v259
        %v261 = vpop.xlane.xlu0 %260
        %v262 = vmul.f32 %v261, 0.00390625
        %v263 = vmul.f32 %v253, %v253
        %v264 = vmul.f32 %v255, %v255
        %v265 = vadd.f32 %v263, %v264
        %266 = vadd.xlane.f32.xlu0 %v265
        %v267 = vpop.xlane.xlu0 %266
        %v268 = vmul.f32 %v267, 0.00390625
        %v269 = vmul.f32 %v262, %v262
        %v270 = vsub.f32 %v268, %v269
        %v271 = vsub.f32 %v253, %v262
        %v272 = vsub.f32 %v255, %v262
        %v273 = vadd.f32 %v270, 1e-05
        %v274 = vrsqrt.pop %v273
        %v275 = vmul.f32 %v271, %v274
        %v276 = vmul.f32 %v272, %v274
        %vm277 = vcmp.gt.f32.partialorder %v275, 0.0
        %vm278 = vcmp.gt.f32.partialorder %v276, 0.0
        %v279 = vmul.f32 %v275, 0.2
        %v280 = vmul.f32 %v276, 0.2
        %v281 = vsel %vm277, %v275, %v279
        %v282 = vsel %vm278, %v276, %v280
        %283 = vst [vmem:[%s174] sm:$0xff] %v281
        %284 = vst [vmem:[%s174 + $0x8] sm:$0xff] %v282
        %s285 = sand.u32 %s75, 1
        %s286 = scalar_lea.sflag [#allocation4], %s285
        %s287 = sand.u32 %s75, 1
        %s288 = smul.addr %s287, 16
        %s289 = scalar_lea.vmem [#allocation7], %s288
        // Predicated region
        $region37: #{tpu_custom_call.1} parent=27 // pred_check
          %p290 = pneg %p85
        $region38: #{tpu_custom_call.1} parent=27 // pred_check_branch
          %292 = sbr.rel (%p290) target = $region40
        $region39: #{tpu_custom_call.1} parent=27 // pred_region
          %s294 = ssub.s32 256, 256
          %295 = vsyncadd %s286, %s294
          %s296 = smul.addr %s20, 2
          %s297 = smul.addr %s296, 128
          %s298 = scalar_lea.hbm %s2, %s297
          %s300 = sshll.u32 %s289, 4
          %s301 = int_to_ptr.vmem [resolvable:$true] %s300
          %303 = dma.vmem_to_hbm [thread:$0]  %s301, 256, %s298, %s286
        $region40: #{tpu_custom_call.1} parent=27 // pred_fallthru
          _
      $region28: #{tpu_custom_call.1} parent=5 // pred_fallthru
        _
      %p304 = scmp.le.s32.totalorder 2, %s15
      // Predicated region
      $region41: #{tpu_custom_call.1} parent=5 // pred_check
        %p305 = pneg %p304
      $region42: #{tpu_custom_call.1} parent=5 // pred_check_branch
        %307 = sbr.rel (%p305) target = $region44
      $region43: #{tpu_custom_call.1} parent=5 // pred_region
        %s308 = ssub.s32 %s15, 2
        // Predicated region
        $region45: #{tpu_custom_call.1} parent=43 // pred_check
          %p309 = pneg %p91
        $region46: #{tpu_custom_call.1} parent=43 // pred_check_branch
          %311 = sbr.rel (%p309) target = $region48
        $region47: #{tpu_custom_call.1} parent=43 // pred_region
          %s312 = sand.u32 %s76, 1
          %s313 = scalar_lea.sflag [#allocation4], %s312
          %s314 = sand.u32 %s76, 1
          %s315 = smul.addr %s314, 16
          %s316 = scalar_lea.vmem [#allocation7], %s315
          %317 = dma.done %s313, 256
        $region48: #{tpu_custom_call.1} parent=43 // pred_fallthru
          _
      $region44: #{tpu_custom_call.1} parent=5 // pred_fallthru
        _
    $region6: #{tpu_custom_call.1} parent=1 // loop_footer
      %s19 = sadd.s32 1, %s15
    $region7: #{tpu_custom_call.1} parent=1 // loop_footer_branch
      %14 = sbr.rel target = $region3
    $region8: #{tpu_custom_call.1} parent=1 // loop_exit
      _
    %318 = vsyncpa [#allocation3], 1
    %s319 = scalar_lea.sflag [#allocation3], 1
    %320 = vsyncpa %s319, 1
    %321 = vsyncpa [#allocation6], 1
    %322 = vsyncpa [#allocation4], 1
    %s323 = scalar_lea.sflag [#allocation4], 1
    %324 = vsyncpa %s323, 1

</llo_original>
